<compile_context>
chip_gen: v6e
topology: v6e:2x2x1
jax: 0.10.0
libtpu: 0.0.40
codegen_flags: <defaults>
</compile_context>

<pallas_src>
import jax
import jax.numpy as jnp
import numpy as np
from jax.experimental import pallas as pl
from jax.experimental.pallas import tpu as pltpu

NEG_SLOPE = 0.01  # PyTorch LeakyReLU default
BN_EPS = 1e-5


def _toeplitz_per_kh(w_hwio, W, dtype):
    """Fold the 3 horizontal taps of 3x3 HWIO conv weights into per-kh matmul RHS.

    Returns T of shape (3, W*C_in, W*C_out) such that for an input slab
    x2d[h, w_in*C_in + ci] = x[h, w_in, ci]:

        y[h] = sum_kh  shift_kh(x2d)[h] @ T[kh]       (shift_kh: row h <- row h+kh-1)

    equals the 'same'-padded 3x3 convolution laid out as (H, W*C_out).  Horizontal
    zero padding is realized by the Toeplitz structure (missing bands are zero).
    """
    _, _, c_in, c_out = w_hwio.shape
    w_in = np.arange(W)[:, None, None]
    w_out = np.arange(W)[None, :, None]
    kw = np.arange(3)[None, None, :]
    sel = jnp.asarray((w_in == w_out + kw - 1).astype(np.float32))     # (W, W, 3)
    # T[kh, w_in, ci, w_out, co] = sum_kw sel[w_in, w_out, kw] * w[kh, kw, ci, co]
    t = jnp.einsum("vwk,hkio->hviwo", sel, w_hwio.astype(jnp.float32))
    return t.reshape(3, W * c_in, W * c_out).astype(dtype)


def _pick_batch_fold(N, H, max_rows=256):
    """Largest divisor B of N with B*H <= max_rows (keeps live slabs vreg/VMEM friendly)."""
    b = 1
    for cand in range(1, N + 1):
        if N % cand == 0 and cand * H <= max_rows:
            b = cand
    return b


def fused_double_conv(x_nhwc, p1, p2):
    """Fused [Conv3x3(pad=1) + BN + LeakyReLU] x 2, inference mode.

    x_nhwc: (N, H, W, C_in).  Returns (N, H, W, C_out).
    """
    N, H, W, C_in = x_nhwc.shape
    C_out = p1["w"].shape[-1]
    WCi, WCo = W * C_in, W * C_out

    # Batch fold: B samples per grid step -> M = B*H matmul rows.
    # NOTE(v7x): with tiny N this can collapse the grid to a single step (serializes
    # onto one of the two TensorCores); at realistic batch sizes the grid stays a
    # multiple of 2 and "parallel" shards it across both cores.
    B = _pick_batch_fold(N, H)
    G = N // B
    BH = B * H

    # Wrapper-side glue (cheap XLA ops): lane-fold channels, build per-kh Toeplitz
    # weights in bf16, pre-broadcast the folded BN affine (no in-kernel broadcasts).
    x3d = x_nhwc.reshape(G, BH, WCi)
    t1 = _toeplitz_per_kh(p1["w"], W, jnp.bfloat16)                    # (3, WCi, WCo)
    t2 = _toeplitz_per_kh(p2["w"], W, jnp.bfloat16)                    # (3, WCo, WCo)
    aff = jnp.stack(
        [jnp.tile(p1["scale"], W), jnp.tile(p1["shift"], W),
         jnp.tile(p2["scale"], W), jnp.tile(p2["shift"], W)],
        axis=0).astype(jnp.float32)                                    # (4, WCo)
    aff_b = jnp.broadcast_to(aff[:, None, :], (4, BH, WCo))            # (4, BH, WCo)

    def kernel(x_ref, t1_ref, t2_ref, aff_ref, o_ref):
        # x_ref:   (BH, W*C_in)          B samples stacked on the row (sublane) axis
        # t1_ref:  (3, W*C_in,  W*C_out) per-kh Toeplitz weights, layer 1 (bf16)
        # t2_ref:  (3, W*C_out, W*C_out) per-kh Toeplitz weights, layer 2 (bf16)
        # aff_ref: (4, BH, W*C_out)      pre-broadcast scale1, shift1, scale2, shift2
        # o_ref:   (BH, W*C_out)         lane-dense output slab

        # Per-sample halo masks: row h of the slab belongs to sample h // H.
        row = jax.lax.broadcasted_iota(jnp.int32, (BH, 1), 0) % H
        top_mask = row != 0          # a row above exists within the same sample
        bot_mask = row != (H - 1)    # a row below exists within the same sample

        def conv_bn_lrelu(x_f32, t_ref, scale, shift):
            # 3 row-shifted matmuls (kh = 0, 1, 2) accumulating in f32.
            # roll(+1): row h <- row h-1 ; roll(BH-1) == roll(-1): row h <- row h+1.
            x_dn = jnp.where(top_mask, pltpu.roll(x_f32, shift=1, axis=0), 0.0)
            x_up = jnp.where(bot_mask, pltpu.roll(x_f32, shift=BH - 1, axis=0), 0.0)
            acc = jnp.dot(x_dn.astype(jnp.bfloat16), t_ref[0],
                          preferred_element_type=jnp.float32)
            acc += jnp.dot(x_f32.astype(jnp.bfloat16), t_ref[1],
                           preferred_element_type=jnp.float32)
            acc += jnp.dot(x_up.astype(jnp.bfloat16), t_ref[2],
                           preferred_element_type=jnp.float32)
            y = acc * scale + shift            # folded conv-bias + BatchNorm affine
            return jnp.where(y >= 0, y, NEG_SLOPE * y)   # LeakyReLU (Dropout = id)

        x0 = x_ref[...].astype(jnp.float32)
        y1 = conv_bn_lrelu(x0, t1_ref, aff_ref[0], aff_ref[1])
        y2 = conv_bn_lrelu(y1, t2_ref, aff_ref[2], aff_ref[3])   # intermediate stays on-chip
        o_ref[...] = y2.astype(o_ref.dtype)    # unmasked lane-dense store

    out = pl.pallas_call(
        kernel,
        out_shape=jax.ShapeDtypeStruct((G, BH, WCo), x_nhwc.dtype),
        grid=(G,),
        in_specs=[
            pl.BlockSpec((None, BH, WCi), lambda g: (g, 0, 0)),
            pl.BlockSpec((3, WCi, WCo), lambda g: (0, 0, 0)),
            pl.BlockSpec((3, WCo, WCo), lambda g: (0, 0, 0)),
            pl.BlockSpec((4, BH, WCo), lambda g: (0, 0, 0)),
        ],
        out_specs=pl.BlockSpec((None, BH, WCo), lambda g: (g, 0, 0)),
        compiler_params=pltpu.CompilerParams(dimension_semantics=("parallel",)),
    )(x3d, t1, t2, aff_b)

    return out.reshape(N, H, W, C_out)


def make_block_params(key, c_in, c_out):
    """Deterministic synthetic params for Conv2d + BatchNorm2d, folded for inference."""
    k1, k2, k3, k4 = jax.random.split(key, 4)
    w = 0.1 * jax.random.normal(k1, (3, 3, c_in, c_out), jnp.float32)   # HWIO
    b = 0.1 * jax.random.normal(k2, (c_out,), jnp.float32)              # conv bias
    gamma = 1.0 + 0.1 * jax.random.normal(k3, (c_out,), jnp.float32)    # BN weight
    beta = 0.1 * jax.random.normal(k4, (c_out,), jnp.float32)           # BN bias
    running_mean = jnp.zeros((c_out,), jnp.float32)                     # PyTorch default
    running_var = jnp.ones((c_out,), jnp.float32)                       # PyTorch default
    scale = gamma / jnp.sqrt(running_var + BN_EPS)
    shift = beta + (b - running_mean) * scale
    return dict(w=w, scale=scale, shift=shift)


def conv_module_forward(x_nchw, params):
    """Full `Conv` module forward. Input/output are NCHW like PyTorch."""
    x = jnp.transpose(x_nchw, (0, 2, 3, 1))               # NCHW -> NHWC
    y = fused_double_conv(x, params[0], params[1])        # one fused pallas_call
    return jnp.transpose(y, (0, 3, 1, 2))                 # NHWC -> NCHW


def conv_module_reference(x_nchw, params):
    """Pure-JAX reference (lax conv, bf16 operands / f32 accumulate, like the kernel)."""
    x = jnp.transpose(x_nchw, (0, 2, 3, 1)).astype(jnp.float32)
    for p in params:
        y = jax.lax.conv_general_dilated(
            x.astype(jnp.bfloat16), p["w"].astype(jnp.bfloat16),
            window_strides=(1, 1), padding="SAME",
            dimension_numbers=("NHWC", "HWIO", "NHWC"),
            preferred_element_type=jnp.float32,
        )
        y = y * p["scale"][None, None, None, :] + p["shift"][None, None, None, :]
        x = jnp.where(y >= 0, y, NEG_SLOPE * y)
    return jnp.transpose(x, (0, 3, 1, 2))


if __name__ == "__main__":
    N, C_in, C_out, H, W = 2, 4, 8, 16, 16

    root = jax.random.PRNGKey(0)
    kx, k1, k2 = jax.random.split(root, 3)
    x = jax.random.normal(kx, (N, C_in, H, W), jnp.float32)
    params = [make_block_params(k1, C_in, C_out),
              make_block_params(k2, C_out, C_out)]

    out = jax.jit(conv_module_forward)(x, params)
    out = jax.block_until_ready(out)

    ref = conv_module_reference(x, params)
    assert out.shape == (N, C_out, H, W)
    # bf16 MXU operands (f32 accumulate) vs. bf16-cast reference: loosened tolerance.
    assert jnp.allclose(out, ref, atol=2e-2, rtol=2e-2), "mismatch vs reference"

    print("KERNEL_OK")
</pallas_src>

<mosaic_0001>
module attributes {stable_mosaic.version = 11 : i64} {
  func.func @kernel(%arg0: i32, %arg1: memref<1x32x64xf32, #tpu.memory_space<vmem>>, %arg2: memref<3x64x128xbf16, #tpu.memory_space<vmem>>, %arg3: memref<3x128x128xbf16, #tpu.memory_space<vmem>>, %arg4: memref<4x32x128xf32, #tpu.memory_space<vmem>>, %arg5: memref<1x32x128xf32, #tpu.memory_space<vmem>>) attributes {dimension_semantics = [#tpu.dimension_semantics<parallel>], iteration_bounds = array<i64: 1>, scalar_prefetch = 0 : i64, scratch_operands = 0 : i64, tpu.core_type = #tpu.core_type<tc>, window_params = [{transform_indices = @transform_0, window_bounds = array<i64: 1, 32, 64>}, {pipeline_mode = #tpu.pipeline_mode<synchronous>, transform_indices = @transform_1, window_bounds = array<i64: 3, 64, 128>}, {pipeline_mode = #tpu.pipeline_mode<synchronous>, transform_indices = @transform_2, window_bounds = array<i64: 3, 128, 128>}, {pipeline_mode = #tpu.pipeline_mode<synchronous>, transform_indices = @transform_3, window_bounds = array<i64: 4, 32, 128>}, {transform_indices = @transform_4, window_bounds = array<i64: 1, 32, 128>}]} {
    %0 = tpu.iota {dimensions = array<i32: 0>} : vector<32x1xi32>
    %c16_i32 = arith.constant 16 : i32
    %c0_i32 = arith.constant 0 : i32
    %1 = arith.cmpi eq, %c16_i32, %c0_i32 : i32
    %c1_i32 = arith.constant 1 : i32
    %2 = arith.select %1, %c1_i32, %c16_i32 : i32
    %3 = vector.broadcast %2 : i32 to vector<32x1xi32>
    %4 = arith.remsi %0, %3 : vector<32x1xi32>
    %c0_i32_0 = arith.constant 0 : i32
    %5 = vector.broadcast %c0_i32_0 : i32 to vector<32x1xi32>
    %6 = arith.cmpi ne, %4, %5 : vector<32x1xi32>
    %c0_i32_1 = arith.constant 0 : i32
    %7 = vector.broadcast %c0_i32_1 : i32 to vector<32x1xi32>
    %8 = arith.cmpi slt, %4, %7 : vector<32x1xi32>
    %c0_i32_2 = arith.constant 0 : i32
    %9 = arith.cmpi slt, %2, %c0_i32_2 : i32
    %10 = vector.broadcast %9 : i1 to vector<32x1xi1>
    %11 = vector.broadcast %10 : vector<32x1xi1> to vector<32x1xi1>
    %12 = arith.xori %8, %11 : vector<32x1xi1>
    %13 = arith.andi %12, %6 : vector<32x1xi1>
    %14 = vector.broadcast %2 : i32 to vector<32x1xi32>
    %15 = arith.addi %4, %14 : vector<32x1xi32>
    %16 = arith.select %13, %15, %4 : vector<32x1xi1>, vector<32x1xi32>
    %c0_i32_3 = arith.constant 0 : i32
    %17 = vector.broadcast %c0_i32_3 : i32 to vector<32x1xi32>
    %18 = arith.cmpi ne, %16, %17 : vector<32x1xi32>
    %c15_i32 = arith.constant 15 : i32
    %19 = vector.broadcast %c15_i32 : i32 to vector<32x1xi32>
    %20 = arith.cmpi ne, %16, %19 : vector<32x1xi32>
    %c0 = arith.constant 0 : index
    %c0_4 = arith.constant 0 : index
    %c0_5 = arith.constant 0 : index
    %21 = vector.load %arg1[%c0, %c0_4, %c0_5] : memref<1x32x64xf32, #tpu.memory_space<vmem>>, vector<1x32x64xf32>
    %22 = vector.shape_cast %21 : vector<1x32x64xf32> to vector<32x64xf32>
    %c0_6 = arith.constant 0 : index
    %c0_7 = arith.constant 0 : index
    %c0_8 = arith.constant 0 : index
    %23 = vector.load %arg4[%c0_6, %c0_7, %c0_8] : memref<4x32x128xf32, #tpu.memory_space<vmem>>, vector<1x32x128xf32>
    %24 = vector.shape_cast %23 : vector<1x32x128xf32> to vector<32x128xf32>
    %c1 = arith.constant 1 : index
    %c0_9 = arith.constant 0 : index
    %c0_10 = arith.constant 0 : index
    %25 = vector.load %arg4[%c1, %c0_9, %c0_10] : memref<4x32x128xf32, #tpu.memory_space<vmem>>, vector<1x32x128xf32>
    %26 = vector.shape_cast %25 : vector<1x32x128xf32> to vector<32x128xf32>
    %c1_i32_11 = arith.constant 1 : i32
    %27 = tpu.dynamic_rotate %22 by %c1_i32_11 dim 0 : vector<32x64xf32>, i32 -> vector<32x64xf32>
    %cst = arith.constant 0.000000e+00 : f32
    %28 = vector.shape_cast %18 : vector<32x1xi1> to vector<32x1xi1>
    %29 = vector.broadcast %28 : vector<32x1xi1> to vector<32x64xi1>
    %30 = vector.broadcast %cst : f32 to vector<32x64xf32>
    %31 = arith.select %29, %27, %30 : vector<32x64xi1>, vector<32x64xf32>
    %c31_i32 = arith.constant 31 : i32
    %32 = tpu.dynamic_rotate %22 by %c31_i32 dim 0 : vector<32x64xf32>, i32 -> vector<32x64xf32>
    %cst_12 = arith.constant 0.000000e+00 : f32
    %33 = vector.shape_cast %20 : vector<32x1xi1> to vector<32x1xi1>
    %34 = vector.broadcast %33 : vector<32x1xi1> to vector<32x64xi1>
    %35 = vector.broadcast %cst_12 : f32 to vector<32x64xf32>
    %36 = arith.select %34, %32, %35 : vector<32x64xi1>, vector<32x64xf32>
    %37 = arith.truncf %31 : vector<32x64xf32> to vector<32x64xbf16>
    %c0_13 = arith.constant 0 : index
    %c0_14 = arith.constant 0 : index
    %c0_15 = arith.constant 0 : index
    %38 = vector.load %arg2[%c0_13, %c0_14, %c0_15] : memref<3x64x128xbf16, #tpu.memory_space<vmem>>, vector<1x64x128xbf16>
    %39 = vector.shape_cast %38 : vector<1x64x128xbf16> to vector<64x128xbf16>
    %cst_16 = arith.constant dense<0.000000e+00> : vector<32x128xf32>
    %40 = tpu.matmul %37, %39, %cst_16 {dimension_numbers = #tpu.dot_dimension_numbers<[1], [0], [0], [1], [0, 0, 1, 1], [], []>} : vector<32x64xbf16>, vector<64x128xbf16>, vector<32x128xf32> -> vector<32x128xf32>
    %41 = arith.truncf %22 : vector<32x64xf32> to vector<32x64xbf16>
    %c1_17 = arith.constant 1 : index
    %c0_18 = arith.constant 0 : index
    %c0_19 = arith.constant 0 : index
    %42 = vector.load %arg2[%c1_17, %c0_18, %c0_19] : memref<3x64x128xbf16, #tpu.memory_space<vmem>>, vector<1x64x128xbf16>
    %43 = vector.shape_cast %42 : vector<1x64x128xbf16> to vector<64x128xbf16>
    %cst_20 = arith.constant dense<0.000000e+00> : vector<32x128xf32>
    %44 = tpu.matmul %41, %43, %cst_20 {dimension_numbers = #tpu.dot_dimension_numbers<[1], [0], [0], [1], [0, 0, 1, 1], [], []>} : vector<32x64xbf16>, vector<64x128xbf16>, vector<32x128xf32> -> vector<32x128xf32>
    %45 = arith.addf %40, %44 : vector<32x128xf32>
    %46 = arith.truncf %36 : vector<32x64xf32> to vector<32x64xbf16>
    %c2 = arith.constant 2 : index
    %c0_21 = arith.constant 0 : index
    %c0_22 = arith.constant 0 : index
    %47 = vector.load %arg2[%c2, %c0_21, %c0_22] : memref<3x64x128xbf16, #tpu.memory_space<vmem>>, vector<1x64x128xbf16>
    %48 = vector.shape_cast %47 : vector<1x64x128xbf16> to vector<64x128xbf16>
    %cst_23 = arith.constant dense<0.000000e+00> : vector<32x128xf32>
    %49 = tpu.matmul %46, %48, %cst_23 {dimension_numbers = #tpu.dot_dimension_numbers<[1], [0], [0], [1], [0, 0, 1, 1], [], []>} : vector<32x64xbf16>, vector<64x128xbf16>, vector<32x128xf32> -> vector<32x128xf32>
    %50 = arith.addf %45, %49 : vector<32x128xf32>
    %51 = arith.mulf %50, %24 : vector<32x128xf32>
    %52 = arith.addf %51, %26 : vector<32x128xf32>
    %cst_24 = arith.constant 0.000000e+00 : f32
    %53 = vector.broadcast %cst_24 : f32 to vector<32x128xf32>
    %54 = arith.cmpf oge, %52, %53 : vector<32x128xf32>
    %cst_25 = arith.constant 0.00999999977 : f32
    %55 = vector.broadcast %cst_25 : f32 to vector<32x128xf32>
    %56 = arith.mulf %55, %52 : vector<32x128xf32>
    %57 = arith.select %54, %52, %56 : vector<32x128xi1>, vector<32x128xf32>
    %c2_26 = arith.constant 2 : index
    %c0_27 = arith.constant 0 : index
    %c0_28 = arith.constant 0 : index
    %58 = vector.load %arg4[%c2_26, %c0_27, %c0_28] : memref<4x32x128xf32, #tpu.memory_space<vmem>>, vector<1x32x128xf32>
    %59 = vector.shape_cast %58 : vector<1x32x128xf32> to vector<32x128xf32>
    %c3 = arith.constant 3 : index
    %c0_29 = arith.constant 0 : index
    %c0_30 = arith.constant 0 : index
    %60 = vector.load %arg4[%c3, %c0_29, %c0_30] : memref<4x32x128xf32, #tpu.memory_space<vmem>>, vector<1x32x128xf32>
    %61 = vector.shape_cast %60 : vector<1x32x128xf32> to vector<32x128xf32>
    %c1_i32_31 = arith.constant 1 : i32
    %62 = tpu.dynamic_rotate %57 by %c1_i32_31 dim 0 : vector<32x128xf32>, i32 -> vector<32x128xf32>
    %cst_32 = arith.constant 0.000000e+00 : f32
    %63 = vector.shape_cast %18 : vector<32x1xi1> to vector<32x1xi1>
    %64 = vector.broadcast %63 : vector<32x1xi1> to vector<32x128xi1>
    %65 = vector.broadcast %cst_32 : f32 to vector<32x128xf32>
    %66 = arith.select %64, %62, %65 : vector<32x128xi1>, vector<32x128xf32>
    %c31_i32_33 = arith.constant 31 : i32
    %67 = tpu.dynamic_rotate %57 by %c31_i32_33 dim 0 : vector<32x128xf32>, i32 -> vector<32x128xf32>
    %cst_34 = arith.constant 0.000000e+00 : f32
    %68 = vector.shape_cast %20 : vector<32x1xi1> to vector<32x1xi1>
    %69 = vector.broadcast %68 : vector<32x1xi1> to vector<32x128xi1>
    %70 = vector.broadcast %cst_34 : f32 to vector<32x128xf32>
    %71 = arith.select %69, %67, %70 : vector<32x128xi1>, vector<32x128xf32>
    %72 = arith.truncf %66 : vector<32x128xf32> to vector<32x128xbf16>
    %c0_35 = arith.constant 0 : index
    %c0_36 = arith.constant 0 : index
    %c0_37 = arith.constant 0 : index
    %73 = vector.load %arg3[%c0_35, %c0_36, %c0_37] : memref<3x128x128xbf16, #tpu.memory_space<vmem>>, vector<1x128x128xbf16>
    %74 = vector.shape_cast %73 : vector<1x128x128xbf16> to vector<128x128xbf16>
    %cst_38 = arith.constant dense<0.000000e+00> : vector<32x128xf32>
    %75 = tpu.matmul %72, %74, %cst_38 {dimension_numbers = #tpu.dot_dimension_numbers<[1], [0], [0], [1], [0, 0, 1, 1], [], []>} : vector<32x128xbf16>, vector<128x128xbf16>, vector<32x128xf32> -> vector<32x128xf32>
    %76 = arith.truncf %57 : vector<32x128xf32> to vector<32x128xbf16>
    %c1_39 = arith.constant 1 : index
    %c0_40 = arith.constant 0 : index
    %c0_41 = arith.constant 0 : index
    %77 = vector.load %arg3[%c1_39, %c0_40, %c0_41] : memref<3x128x128xbf16, #tpu.memory_space<vmem>>, vector<1x128x128xbf16>
    %78 = vector.shape_cast %77 : vector<1x128x128xbf16> to vector<128x128xbf16>
    %cst_42 = arith.constant dense<0.000000e+00> : vector<32x128xf32>
    %79 = tpu.matmul %76, %78, %cst_42 {dimension_numbers = #tpu.dot_dimension_numbers<[1], [0], [0], [1], [0, 0, 1, 1], [], []>} : vector<32x128xbf16>, vector<128x128xbf16>, vector<32x128xf32> -> vector<32x128xf32>
    %80 = arith.addf %75, %79 : vector<32x128xf32>
    %81 = arith.truncf %71 : vector<32x128xf32> to vector<32x128xbf16>
    %c2_43 = arith.constant 2 : index
    %c0_44 = arith.constant 0 : index
    %c0_45 = arith.constant 0 : index
    %82 = vector.load %arg3[%c2_43, %c0_44, %c0_45] : memref<3x128x128xbf16, #tpu.memory_space<vmem>>, vector<1x128x128xbf16>
    %83 = vector.shape_cast %82 : vector<1x128x128xbf16> to vector<128x128xbf16>
    %cst_46 = arith.constant dense<0.000000e+00> : vector<32x128xf32>
    %84 = tpu.matmul %81, %83, %cst_46 {dimension_numbers = #tpu.dot_dimension_numbers<[1], [0], [0], [1], [0, 0, 1, 1], [], []>} : vector<32x128xbf16>, vector<128x128xbf16>, vector<32x128xf32> -> vector<32x128xf32>
    %85 = arith.addf %80, %84 : vector<32x128xf32>
    %86 = arith.mulf %85, %59 : vector<32x128xf32>
    %87 = arith.addf %86, %61 : vector<32x128xf32>
    %cst_47 = arith.constant 0.000000e+00 : f32
    %88 = vector.broadcast %cst_47 : f32 to vector<32x128xf32>
    %89 = arith.cmpf oge, %87, %88 : vector<32x128xf32>
    %cst_48 = arith.constant 0.00999999977 : f32
    %90 = vector.broadcast %cst_48 : f32 to vector<32x128xf32>
    %91 = arith.mulf %90, %87 : vector<32x128xf32>
    %92 = arith.select %89, %87, %91 : vector<32x128xi1>, vector<32x128xf32>
    %c0_49 = arith.constant 0 : index
    %c0_50 = arith.constant 0 : index
    %c0_51 = arith.constant 0 : index
    %93 = vector.load %arg5[%c0_49, %c0_50, %c0_51] : memref<1x32x128xf32, #tpu.memory_space<vmem>>, vector<1x32x128xf32>
    %94 = vector.shape_cast %93 : vector<1x32x128xf32> to vector<32x128xf32>
    %95 = vector.shape_cast %92 : vector<32x128xf32> to vector<1x32x128xf32>
    tpu.vector_store %arg5[%c0_49, %c0_50, %c0_51], %95 {strides = array<i32>} : memref<1x32x128xf32, #tpu.memory_space<vmem>>, vector<1x32x128xf32>,
    return
  }
  func.func @transform_0(%arg0: i32) -> (i32, i32, i32) {
    %c0_i32 = arith.constant 0 : i32
    %c0_i32_0 = arith.constant 0 : i32
    %c0_i32_1 = arith.constant 0 : i32
    return %arg0, %c0_i32, %c0_i32_0 : i32, i32, i32
  }
  func.func @transform_1(%arg0: i32) -> (i32, i32, i32) {
    %c0_i32 = arith.constant 0 : i32
    %c0_i32_0 = arith.constant 0 : i32
    %c0_i32_1 = arith.constant 0 : i32
    %c0_i32_2 = arith.constant 0 : i32
    return %c0_i32, %c0_i32_0, %c0_i32_1 : i32, i32, i32
  }
  func.func @transform_2(%arg0: i32) -> (i32, i32, i32) {
    %c0_i32 = arith.constant 0 : i32
    %c0_i32_0 = arith.constant 0 : i32
    %c0_i32_1 = arith.constant 0 : i32
    %c0_i32_2 = arith.constant 0 : i32
    return %c0_i32, %c0_i32_0, %c0_i32_1 : i32, i32, i32
  }
  func.func @transform_3(%arg0: i32) -> (i32, i32, i32) {
    %c0_i32 = arith.constant 0 : i32
    %c0_i32_0 = arith.constant 0 : i32
    %c0_i32_1 = arith.constant 0 : i32
    %c0_i32_2 = arith.constant 0 : i32
    return %c0_i32, %c0_i32_0, %c0_i32_1 : i32, i32, i32
  }
  func.func @transform_4(%arg0: i32) -> (i32, i32, i32) {
    %c0_i32 = arith.constant 0 : i32
    %c0_i32_0 = arith.constant 0 : i32
    %c0_i32_1 = arith.constant 0 : i32
    return %arg0, %c0_i32, %c0_i32_0 : i32, i32, i32
  }
}

</mosaic_0001>

<llo_original>
// kernel: tile.23
$region0: #{tile.23}
  #allocation0 [shape = 's32[1]{0}', space=sflag, size = 0x4, scoped, tag = 'scoped memory for tile.23']
  %s0 = inlined_call_operand.vmem [shape: f32[8], index: 0, kind: input, shape index: {}]
  %s1 = inlined_call_operand.vmem [shape: f32[16,8], index: 1, kind: output, shape index: {}]
  // Predicated region
  $region2: #{tile.23} parent=0 // pred_check
    _
  $region3: #{tile.23} parent=0 // pred_check_branch
    %3 = sbr.rel (0) target = $region5
  $region4: #{tile.23} parent=0 // pred_region
    _
  $region5: #{tile.23} parent=0 // pred_fallthru
    _
  %v4 = vld [vmem:[%s0] ss:$0 sm:$0xff]
  %5 = vst [vmem:[%s1] sm:$0xff] %v4
  %s6 = scalar_lea.vmem %s1, 8
  %7 = vst [vmem:[%s6] sm:$0xff] %v4

// kernel: tile.36
$region0: #{tile.36}
  %s0 = inlined_call_operand.vmem [shape: f32[16,8], index: 0, kind: input, shape index: {}]
  %s1 = inlined_call_operand.vmem [shape: f32[1,128], index: 1, kind: output, shape index: {}]
  $region1: #{tile.36} parent=0
    #allocation0 [shape = 'u8[4096]{0}', space=vmem, size = 0x1000, scoped, tag = 'scoped mem for output reshape']
    %v2 = vld [vmem:[%s0] sm:$0x1]
    %vm3 = vcmask 64512
    %4 = vst.msk [vmem:[#allocation0] sm:$0x1] %vm3, %v2
    %s5 = scalar_lea.vmem %s0, 15
    %v6 = vld [vmem:[%s5] sm:$0x1]
    %7 = vrot.lane.b32.xlu0 %v6, 120
    %v8 = vpop.permute.xlu0 %7
    %vm9 = vcmask 1048512
    %10 = vst.msk [vmem:[#allocation0] sm:$0x1] %vm9, %v8
    %s11 = scalar_lea.vmem %s0, 14
    %v12 = vld [vmem:[%s11] sm:$0x1]
    %13 = vrot.lane.b32.xlu0 %v12, 112
    %v14 = vpop.permute.xlu0 %13
    %vm15 = vcmask 982912
    %16 = vst.msk [vmem:[#allocation0] sm:$0x1] %vm15, %v14
    %s17 = scalar_lea.vmem %s0, 13
    %v18 = vld [vmem:[%s17] sm:$0x1]
    %19 = vrot.lane.b32.xlu0 %v18, 104
    %v20 = vpop.permute.xlu0 %19
    %vm21 = vcmask 917312
    %22 = vst.msk [vmem:[#allocation0] sm:$0x1] %vm21, %v20
    %s23 = scalar_lea.vmem %s0, 12
    %v24 = vld [vmem:[%s23] sm:$0x1]
    %25 = vrot.lane.b32.xlu0 %v24, 96
    %v26 = vpop.permute.xlu0 %25
    %vm27 = vcmask 851712
    %28 = vst.msk [vmem:[#allocation0] sm:$0x1] %vm27, %v26
    %s29 = scalar_lea.vmem %s0, 11
    %v30 = vld [vmem:[%s29] sm:$0x1]
    %31 = vrot.lane.b32.xlu0 %v30, 88
    %v32 = vpop.permute.xlu0 %31
    %vm33 = vcmask 786112
    %34 = vst.msk [vmem:[#allocation0] sm:$0x1] %vm33, %v32
    %s35 = scalar_lea.vmem %s0, 10
    %v36 = vld [vmem:[%s35] sm:$0x1]
    %37 = vrot.lane.b32.xlu0 %v36, 80
    %v38 = vpop.permute.xlu0 %37
    %vm39 = vcmask 720512
    %40 = vst.msk [vmem:[#allocation0] sm:$0x1] %vm39, %v38
    %s41 = scalar_lea.vmem %s0, 9
    %v42 = vld [vmem:[%s41] sm:$0x1]
    %43 = vrot.lane.b32.xlu0 %v42, 72
    %v44 = vpop.permute.xlu0 %43
    %vm45 = vcmask 654912
    %46 = vst.msk [vmem:[#allocation0] sm:$0x1] %vm45, %v44
    %s47 = scalar_lea.vmem %s0, 8
    %v48 = vld [vmem:[%s47] sm:$0x1]
    %49 = vrot.lane.b32.xlu0 %v48, 64
    %v50 = vpop.permute.xlu0 %49
    %vm51 = vcmask 589312
    %52 = vst.msk [vmem:[#allocation0] sm:$0x1] %vm51, %v50
    %s53 = scalar_lea.vmem %s0, 7
    %v54 = vld [vmem:[%s53] sm:$0x1]
    %55 = vrot.lane.b32.xlu0 %v54, 56
    %v56 = vpop.permute.xlu0 %55
    %vm57 = vcmask 523712
    %58 = vst.msk [vmem:[#allocation0] sm:$0x1] %vm57, %v56
    %s59 = scalar_lea.vmem %s0, 6
    %v60 = vld [vmem:[%s59] sm:$0x1]
    %61 = vrot.lane.b32.xlu0 %v60, 48
    %v62 = vpop.permute.xlu0 %61
    %vm63 = vcmask 458112
    %64 = vst.msk [vmem:[#allocation0] sm:$0x1] %vm63, %v62
    %s65 = scalar_lea.vmem %s0, 5
    %v66 = vld [vmem:[%s65] sm:$0x1]
    %67 = vrot.lane.b32.xlu0 %v66, 40
    %v68 = vpop.permute.xlu0 %67
    %vm69 = vcmask 392512
    %70 = vst.msk [vmem:[#allocation0] sm:$0x1] %vm69, %v68
    %s71 = scalar_lea.vmem %s0, 4
    %v72 = vld [vmem:[%s71] sm:$0x1]
    %73 = vrot.lane.b32.xlu0 %v72, 32
    %v74 = vpop.permute.xlu0 %73
    %vm75 = vcmask 326912
    %76 = vst.msk [vmem:[#allocation0] sm:$0x1] %vm75, %v74
    %s77 = scalar_lea.vmem %s0, 3
    %v78 = vld [vmem:[%s77] sm:$0x1]
    %79 = vrot.lane.b32.xlu0 %v78, 24
    %v80 = vpop.permute.xlu0 %79
    %vm81 = vcmask 261312
    %82 = vst.msk [vmem:[#allocation0] sm:$0x1] %vm81, %v80
    %s83 = scalar_lea.vmem %s0, 2
    %v84 = vld [vmem:[%s83] sm:$0x1]
    %85 = vrot.lane.b32.xlu0 %v84, 16
    %v86 = vpop.permute.xlu0 %85
    %vm87 = vcmask 195712
    %88 = vst.msk [vmem:[#allocation0] sm:$0x1] %vm87, %v86
    %s89 = scalar_lea.vmem %s0, 1
    %v90 = vld [vmem:[%s89] sm:$0x1]
    %91 = vrot.lane.b32.xlu0 %v90, 8
    %v92 = vpop.permute.xlu0 %91
    %vm93 = vcmask 130112
    %94 = vst.msk [vmem:[#allocation0] sm:$0x1] %vm93, %v92
    %s96 = sshll.u32 1, 1
    %s97 = ssub.s32 %s96, 1
    %v99 = vld [vmem:[#allocation0] sm:%s97]
    %s100 = sshll.u32 1, 1
    %s101 = ssub.s32 %s100, 1
    %102 = vst [vmem:[%s1] sm:%s101] %v99

// kernel: conv_module_forward.1
$region0: #{conv_module_forward.1}
  #allocation0 [shape = 'u32[]', space=smem, size = 0x4, offset = 0x4, fixed_abs, tag = 'smem constant byte address 0x4 - core index']
  #allocation1 [shape = 'u32[144,128]{1,0:T(1,128)}', space=vmem, size = 0x12000, scoped, tag = 'internal scratch']
  %s0 = inlined_call_operand.vmem [shape: f32[1,32,64], index: 0, kind: input, shape index: {}]
  %s1 = inlined_call_operand.vmem [shape: bf16[3,64,128], index: 1, kind: input, shape index: {}]
  %s2 = inlined_call_operand.vmem [shape: bf16[3,128,128], index: 2, kind: input, shape index: {}]
  %s3 = inlined_call_operand.vmem [shape: f32[4,32,128], index: 3, kind: input, shape index: {}]
  %s4 = inlined_call_operand.vmem [shape: f32[1,32,128], index: 4, kind: output, shape index: {}]
  %s5 = sld [smem:[#allocation0]]
  $region26: #{conv_module_forward.1} parent=0
    _
  %s7 = ssub.s32 1, %s5
  %s8 = scalar_select 0, %s7, %s5
  // Predicated region
  $region2: #{conv_module_forward.1} parent=0 // pred_check
    _
  $region3: #{conv_module_forward.1} parent=0 // pred_check_branch
    %10 = sbr.rel (0) target = $region5
  $region4: #{conv_module_forward.1} parent=0 // pred_region
    _
  $region5: #{conv_module_forward.1} parent=0 // pred_fallthru
    _
  // Predicated region
  $region6: #{conv_module_forward.1} parent=0 // pred_check
    _
  $region7: #{conv_module_forward.1} parent=0 // pred_check_branch
    %12 = sbr.rel (0) target = $region9
  $region8: #{conv_module_forward.1} parent=0 // pred_region
    _
  $region9: #{conv_module_forward.1} parent=0 // pred_fallthru
    _
  // Predicated region
  $region10: #{conv_module_forward.1} parent=0 // pred_check
    _
  $region11: #{conv_module_forward.1} parent=0 // pred_check_branch
    %14 = sbr.rel (0) target = $region13
  $region12: #{conv_module_forward.1} parent=0 // pred_region
    _
  $region13: #{conv_module_forward.1} parent=0 // pred_fallthru
    _
  // Predicated region
  $region14: #{conv_module_forward.1} parent=0 // pred_check
    _
  $region15: #{conv_module_forward.1} parent=0 // pred_check_branch
    %16 = sbr.rel (0) target = $region17
  $region16: #{conv_module_forward.1} parent=0 // pred_region
    _
  $region17: #{conv_module_forward.1} parent=0 // pred_fallthru
    _
  %v18 = vlaneseq
  %v19 = vshrl.u32 %v18, 7
  %v20 = vadd.s32 %v19, 8
  %v21 = vadd.s32 %v19, 16
  %v22 = vadd.s32 %v19, 24
  %vm23 = vcmp.lt.s32.totalorder %v19, 0
  %v24 = vsub.s32 0, %v19
  %v25 = vsel %vm23, %v24, %v19
  %v26 = vshrl.u32 %v25, 4
  %v27 = vand.u32 %v25, 15
  %v28 = vsub.s32 0, %v27
  %v29 = vsel %vm23, %v28, %v27
  %vm30 = vcmp.lt.s32.totalorder %v20, 0
  %v31 = vsub.s32 0, %v20
  %v32 = vsel %vm30, %v31, %v20
  %v33 = vshrl.u32 %v32, 4
  %v34 = vand.u32 %v32, 15
  %v35 = vsub.s32 0, %v34
  %v36 = vsel %vm30, %v35, %v34
  %vm37 = vcmp.lt.s32.totalorder %v21, 0
  %v38 = vsub.s32 0, %v21
  %v39 = vsel %vm37, %v38, %v21
  %v40 = vshrl.u32 %v39, 4
  %v41 = vand.u32 %v39, 15
  %v42 = vsub.s32 0, %v41
  %v43 = vsel %vm37, %v42, %v41
  %vm44 = vcmp.lt.s32.totalorder %v22, 0
  %v45 = vsub.s32 0, %v22
  %v46 = vsel %vm44, %v45, %v22
  %v47 = vshrl.u32 %v46, 4
  %v48 = vand.u32 %v46, 15
  %v49 = vsub.s32 0, %v48
  %v50 = vsel %vm44, %v49, %v48
  %vm51 = vcmp.ne.s32.totalorder %v29, 0
  %vm52 = vcmp.ne.s32.totalorder %v36, 0
  %vm53 = vcmp.ne.s32.totalorder %v43, 0
  %vm54 = vcmp.ne.s32.totalorder %v50, 0
  %vm55 = vcmp.lt.s32.totalorder %v29, 0
  %vm56 = vcmp.lt.s32.totalorder %v36, 0
  %vm57 = vcmp.lt.s32.totalorder %v43, 0
  %vm58 = vcmp.lt.s32.totalorder %v50, 0
  %vm59 = vmand %vm55, %vm51
  %vm60 = vmand %vm56, %vm52
  %vm61 = vmand %vm57, %vm53
  %vm62 = vmand %vm58, %vm54
  %v63 = vadd.s32 %v29, 16
  %v64 = vadd.s32 %v36, 16
  %v65 = vadd.s32 %v43, 16
  %v66 = vadd.s32 %v50, 16
  %v67 = vsel %vm59, %v63, %v29
  %v68 = vsel %vm60, %v64, %v36
  %v69 = vsel %vm61, %v65, %v43
  %v70 = vsel %vm62, %v66, %v50
  %vm71 = vcmp.ne.s32.totalorder %v67, 0
  %vm72 = vcmp.ne.s32.totalorder %v68, 0
  %vm73 = vcmp.ne.s32.totalorder %v69, 0
  %vm74 = vcmp.ne.s32.totalorder %v70, 0
  %vm75 = vcmp.ne.s32.totalorder %v67, 15
  %vm76 = vcmp.ne.s32.totalorder %v68, 15
  %vm77 = vcmp.ne.s32.totalorder %v69, 15
  %vm78 = vcmp.ne.s32.totalorder %v70, 15
  %v79 = vld [vmem:[%s0] sm:$0xff]
  %v80 = vld [vmem:[%s0 + $0x8] sm:$0xff]
  %v81 = vld [vmem:[%s0 + $0x10] sm:$0xff]
  %v82 = vld [vmem:[%s0 + $0x18] sm:$0xff]
  %v83 = vld [vmem:[%s3] sm:$0xff]
  %v84 = vld [vmem:[%s3 + $0x8] sm:$0xff]
  %v85 = vld [vmem:[%s3 + $0x10] sm:$0xff]
  %v86 = vld [vmem:[%s3 + $0x18] sm:$0xff]
  %s87 = scalar_lea.vmem %s3, 32
  %v88 = vld [vmem:[%s87] sm:$0xff]
  %v89 = vld [vmem:[%s87 + $0x8] sm:$0xff]
  %v90 = vld [vmem:[%s87 + $0x10] sm:$0xff]
  %v91 = vld [vmem:[%s87 + $0x18] sm:$0xff]
  %v92 = vrot.slane %v79, 7
  %v93 = vrot.slane %v80, 7
  %v94 = vrot.slane %v81, 7
  %v95 = vrot.slane %v82, 7
  %vm96 = vcmp.lt.s32.totalorder %v19, 1
  %v97 = vsel %vm96, %v94, %v95
  %v98 = vsel %vm96, %v93, %v94
  %v99 = vsel %vm96, %v92, %v93
  %v100 = vsel %vm96, %v95, %v92
  %v101 = vsel %vm71, 1, 0
  %v102 = vsel %vm72, 1, 0
  %v103 = vsel %vm73, 1, 0
  %v104 = vsel %vm74, 1, 0
  %vm105 = vcmp.eq.s32.totalorder %v101, 1
  %vm106 = vcmp.eq.s32.totalorder %v102, 1
  %vm107 = vcmp.eq.s32.totalorder %v103, 1
  %vm108 = vcmp.eq.s32.totalorder %v104, 1
  %v109 = vsel %vm105, %v100, 0.0
  %v110 = vsel %vm106, %v99, 0.0
  %v111 = vsel %vm107, %v98, 0.0
  %v112 = vsel %vm108, %v97, 0.0
  %v113 = vrot.slane %v79, 1
  %v114 = vrot.slane %v80, 1
  %v115 = vrot.slane %v81, 1
  %v116 = vrot.slane %v82, 1
  %vm117 = vcmp.lt.s32.totalorder %v19, 7
  %v118 = vsel %vm117, %v115, %v116
  %v119 = vsel %vm117, %v114, %v115
  %v120 = vsel %vm117, %v113, %v114
  %v121 = vsel %vm117, %v116, %v113
  %v122 = vsel %vm75, 1, 0
  %v123 = vsel %vm76, 1, 0
  %v124 = vsel %vm77, 1, 0
  %v125 = vsel %vm78, 1, 0
  %vm126 = vcmp.eq.s32.totalorder %v122, 1
  %vm127 = vcmp.eq.s32.totalorder %v123, 1
  %vm128 = vcmp.eq.s32.totalorder %v124, 1
  %vm129 = vcmp.eq.s32.totalorder %v125, 1
  %v130 = vsel %vm126, %v120, 0.0
  %v131 = vsel %vm127, %v119, 0.0
  %v132 = vsel %vm128, %v118, 0.0
  %v133 = vsel %vm129, %v121, 0.0
  %v134 = vpack.c.bf16 %v110, %v109
  %v135 = vpack.c.bf16 %v112, %v111
  %v136 = vld [vmem:[%s1] sm:$0xf]
  %v137 = vld [vmem:[%s1 + $0x4] sm:$0xf]
  %v138 = vld [vmem:[%s1 + $0x8] sm:$0xf]
  %v139 = vld [vmem:[%s1 + $0xc] sm:$0xf]
  %v140 = vld [vmem:[%s1 + $0x10] sm:$0xf]
  %v141 = vld [vmem:[%s1 + $0x14] sm:$0xf]
  %v142 = vld [vmem:[%s1 + $0x18] sm:$0xf]
  %v143 = vld [vmem:[%s1 + $0x1c] sm:$0xf]
  %v144 = vpack.c.bf16 %v80, %v79
  %v145 = vpack.c.bf16 %v82, %v81
  %s146 = scalar_lea.vmem %s1, 32
  %v147 = vld [vmem:[%s146] sm:$0xf]
  %v148 = vld [vmem:[%s146 + $0x4] sm:$0xf]
  %v149 = vld [vmem:[%s146 + $0x8] sm:$0xf]
  %v150 = vld [vmem:[%s146 + $0xc] sm:$0xf]
  %v151 = vld [vmem:[%s146 + $0x10] sm:$0xf]
  %v152 = vld [vmem:[%s146 + $0x14] sm:$0xf]
  %v153 = vld [vmem:[%s146 + $0x18] sm:$0xf]
  %v154 = vld [vmem:[%s146 + $0x1c] sm:$0xf]
  %v163 = vunpack.c.l.b16 %v147
  %v164 = vunpack.c.l.b16 %v148
  %v165 = vunpack.c.l.b16 %v149
  %v166 = vunpack.c.l.b16 %v150
  %v167 = vunpack.c.l.b16 %v151
  %v168 = vunpack.c.l.b16 %v152
  %v169 = vunpack.c.l.b16 %v153
  %v170 = vunpack.c.l.b16 %v154
  %v171 = vpack.c.b16 %v164, %v163
  %v172 = vpack.c.b16 %v166, %v165
  %v173 = vpack.c.b16 %v168, %v167
  %v174 = vpack.c.b16 %v170, %v169
  %vm179 = vcmask 523264
  %v181 = vsel %vm179, %v144, 0
  %v184 = vsel %vm179, %v145, 0
  %186 = vmatprep.subr.bf16.mxu0 0
  %187 = vmatpush1.bf16.msra.mxu0 0
  %188 = vmatprep.subr.bf16.mxu0 0
  %189 = vmatpush1.bf16.msra.mxu0 0
  %190 = vmatprep.subr.bf16.mxu0 0
  %191 = vmatpush1.bf16.msra.mxu0 0
  %192 = vmatprep.subr.bf16.mxu0 0
  %193 = vmatpush1.bf16.msra.mxu0 0
  %194 = vmatprep.subr.bf16.mxu0 0
  %195 = vmatpush1.bf16.msra.mxu0 %v174
  %196 = vmatprep.subr.bf16.mxu0 0
  %197 = vmatpush1.bf16.msra.mxu0 %v173
  %198 = vmatprep.subr.bf16.mxu0 0
  %199 = vmatpush1.bf16.msra.mxu0 %v172
  %200 = vmatprep.subr.bf16.mxu0 0
  %201 = vmatpush1.bf16.msra.mxu0 %v171
  %202 = vmatprep.subr.bf16.mxu0 0
  %203 = vmatpush2.bf16.msra.mxu0 0
  %204 = vmatprep.subr.bf16.mxu0 0
  %205 = vmatpush2.bf16.msra.mxu0 0
  %206 = vmatprep.subr.bf16.mxu0 0
  %207 = vmatpush2.bf16.msra.mxu0 0
  %208 = vmatprep.subr.bf16.mxu0 0
  %209 = vmatpush2.bf16.msra.mxu0 0
  %210 = vmatprep.subr.bf16.mxu0 0
  %211 = vmatpush2.bf16.msra.mxu0 0
  %212 = vmatprep.subr.bf16.mxu0 0
  %213 = vmatpush2.bf16.msra.mxu0 0
  %214 = vmatprep.subr.bf16.mxu0 0
  %215 = vmatpush2.bf16.msra.mxu0 0
  %216 = vmatprep.subr.bf16.mxu0 0
  %217 = vmatpush2.bf16.msra.mxu0 0
  %218 = vmatprep.mubr.bf16.mxu0 0
  %219 = vmatmul.mubr.bf16.gmra.mxu0 %v181
  %v220 = vpop.f32.mrf.mxu0
  %v221 = vadd.f32 0.0, %v220
  %v222 = vpop.f32.mrf.mxu0
  %v223 = vpop.f32.mrf.mxu0
  %v224 = vadd.f32 0.0, %v223
  %v225 = vpop.f32.mrf.mxu0
  %226 = vmatprep.mubr.bf16.mxu0 0
  %227 = vmatmul.mubr.bf16.gmra.mxu0 %v184
  %v228 = vpop.f32.mrf.mxu0
  %v229 = vadd.f32 0.0, %v228
  %v230 = vpop.f32.mrf.mxu0
  %v231 = vpop.f32.mrf.mxu0
  %v232 = vadd.f32 0.0, %v231
  %v233 = vpop.f32.mrf.mxu0
  %234 = vdwg.mxu0
  %v243 = vunpack.c.l.b16 %v136
  %v244 = vunpack.c.l.b16 %v137
  %v245 = vunpack.c.l.b16 %v138
  %v246 = vunpack.c.l.b16 %v139
  %v247 = vunpack.c.l.b16 %v140
  %v248 = vunpack.c.l.b16 %v141
  %v249 = vunpack.c.l.b16 %v142
  %v250 = vunpack.c.l.b16 %v143
  %v251 = vpack.c.b16 %v244, %v243
  %v252 = vpack.c.b16 %v246, %v245
  %v253 = vpack.c.b16 %v248, %v247
  %v254 = vpack.c.b16 %v250, %v249
  %v260 = vsel %vm179, %v134, 0
  %v263 = vsel %vm179, %v135, 0
  %265 = vmatprep.subr.bf16.mxu0 0
  %266 = vmatpush1.bf16.msra.mxu0 0
  %267 = vmatprep.subr.bf16.mxu0 0
  %268 = vmatpush1.bf16.msra.mxu0 0
  %269 = vmatprep.subr.bf16.mxu0 0
  %270 = vmatpush1.bf16.msra.mxu0 0
  %271 = vmatprep.subr.bf16.mxu0 0
  %272 = vmatpush1.bf16.msra.mxu0 0
  %273 = vmatprep.subr.bf16.mxu0 0
  %274 = vmatpush1.bf16.msra.mxu0 %v254
  %275 = vmatprep.subr.bf16.mxu0 0
  %276 = vmatpush1.bf16.msra.mxu0 %v253
  %277 = vmatprep.subr.bf16.mxu0 0
  %278 = vmatpush1.bf16.msra.mxu0 %v252
  %279 = vmatprep.subr.bf16.mxu0 0
  %280 = vmatpush1.bf16.msra.mxu0 %v251
  %281 = vmatprep.subr.bf16.mxu0 0
  %282 = vmatpush2.bf16.msra.mxu0 0
  %283 = vmatprep.subr.bf16.mxu0 0
  %284 = vmatpush2.bf16.msra.mxu0 0
  %285 = vmatprep.subr.bf16.mxu0 0
  %286 = vmatpush2.bf16.msra.mxu0 0
  %287 = vmatprep.subr.bf16.mxu0 0
  %288 = vmatpush2.bf16.msra.mxu0 0
  %289 = vmatprep.subr.bf16.mxu0 0
  %290 = vmatpush2.bf16.msra.mxu0 0
  %291 = vmatprep.subr.bf16.mxu0 0
  %292 = vmatpush2.bf16.msra.mxu0 0
  %293 = vmatprep.subr.bf16.mxu0 0
  %294 = vmatpush2.bf16.msra.mxu0 0
  %295 = vmatprep.subr.bf16.mxu0 0
  %296 = vmatpush2.bf16.msra.mxu0 0
  %297 = vmatprep.mubr.bf16.mxu0 0
  %298 = vmatmul.mubr.bf16.gmra.mxu0 %v260
  %v299 = vpop.f32.mrf.mxu0
  %v300 = vadd.f32 %v221, %v299
  %v301 = vpop.f32.mrf.mxu0
  %v302 = vpop.f32.mrf.mxu0
  %v303 = vadd.f32 %v224, %v302
  %v304 = vpop.f32.mrf.mxu0
  %305 = vmatprep.mubr.bf16.mxu0 0
  %306 = vmatmul.mubr.bf16.gmra.mxu0 %v263
  %v307 = vpop.f32.mrf.mxu0
  %v308 = vadd.f32 %v229, %v307
  %v309 = vpop.f32.mrf.mxu0
  %v310 = vpop.f32.mrf.mxu0
  %v311 = vadd.f32 %v232, %v310
  %v312 = vpop.f32.mrf.mxu0
  %313 = vdwg.mxu0
  %v314 = vpack.c.bf16 %v131, %v130
  %v315 = vpack.c.bf16 %v133, %v132
  %s316 = scalar_lea.vmem %s1, 64
  %v317 = vld [vmem:[%s316] sm:$0xf]
  %v318 = vld [vmem:[%s316 + $0x4] sm:$0xf]
  %v319 = vld [vmem:[%s316 + $0x8] sm:$0xf]
  %v320 = vld [vmem:[%s316 + $0xc] sm:$0xf]
  %v321 = vld [vmem:[%s316 + $0x10] sm:$0xf]
  %v322 = vld [vmem:[%s316 + $0x14] sm:$0xf]
  %v323 = vld [vmem:[%s316 + $0x18] sm:$0xf]
  %v324 = vld [vmem:[%s316 + $0x1c] sm:$0xf]
  %v333 = vunpack.c.l.b16 %v317
  %v334 = vunpack.c.l.b16 %v318
  %v335 = vunpack.c.l.b16 %v319
  %v336 = vunpack.c.l.b16 %v320
  %v337 = vunpack.c.l.b16 %v321
  %v338 = vunpack.c.l.b16 %v322
  %v339 = vunpack.c.l.b16 %v323
  %v340 = vunpack.c.l.b16 %v324
  %v341 = vpack.c.b16 %v334, %v333
  %v342 = vpack.c.b16 %v336, %v335
  %v343 = vpack.c.b16 %v338, %v337
  %v344 = vpack.c.b16 %v340, %v339
  %v350 = vsel %vm179, %v314, 0
  %v353 = vsel %vm179, %v315, 0
  %355 = vmatprep.subr.bf16.mxu0 0
  %356 = vmatpush1.bf16.msra.mxu0 0
  %357 = vmatprep.subr.bf16.mxu0 0
  %358 = vmatpush1.bf16.msra.mxu0 0
  %359 = vmatprep.subr.bf16.mxu0 0
  %360 = vmatpush1.bf16.msra.mxu0 0
  %361 = vmatprep.subr.bf16.mxu0 0
  %362 = vmatpush1.bf16.msra.mxu0 0
  %363 = vmatprep.subr.bf16.mxu0 0
  %364 = vmatpush1.bf16.msra.mxu0 %v344
  %365 = vmatprep.subr.bf16.mxu0 0
  %366 = vmatpush1.bf16.msra.mxu0 %v343
  %367 = vmatprep.subr.bf16.mxu0 0
  %368 = vmatpush1.bf16.msra.mxu0 %v342
  %369 = vmatprep.subr.bf16.mxu0 0
  %370 = vmatpush1.bf16.msra.mxu0 %v341
  %371 = vmatprep.subr.bf16.mxu0 0
  %372 = vmatpush2.bf16.msra.mxu0 0
  %373 = vmatprep.subr.bf16.mxu0 0
  %374 = vmatpush2.bf16.msra.mxu0 0
  %375 = vmatprep.subr.bf16.mxu0 0
  %376 = vmatpush2.bf16.msra.mxu0 0
  %377 = vmatprep.subr.bf16.mxu0 0
  %378 = vmatpush2.bf16.msra.mxu0 0
  %379 = vmatprep.subr.bf16.mxu0 0
  %380 = vmatpush2.bf16.msra.mxu0 0
  %381 = vmatprep.subr.bf16.mxu0 0
  %382 = vmatpush2.bf16.msra.mxu0 0
  %383 = vmatprep.subr.bf16.mxu0 0
  %384 = vmatpush2.bf16.msra.mxu0 0
  %385 = vmatprep.subr.bf16.mxu0 0
  %386 = vmatpush2.bf16.msra.mxu0 0
  %387 = vmatprep.mubr.bf16.mxu0 0
  %388 = vmatmul.mubr.bf16.gmra.mxu0 %v350
  %v389 = vpop.f32.mrf.mxu0
  %v390 = vadd.f32 0.0, %v389
  %v391 = vpop.f32.mrf.mxu0
  %v392 = vpop.f32.mrf.mxu0
  %v393 = vadd.f32 0.0, %v392
  %v394 = vpop.f32.mrf.mxu0
  %395 = vmatprep.mubr.bf16.mxu0 0
  %396 = vmatmul.mubr.bf16.gmra.mxu0 %v353
  %v397 = vpop.f32.mrf.mxu0
  %v398 = vadd.f32 0.0, %v397
  %v399 = vpop.f32.mrf.mxu0
  %v400 = vpop.f32.mrf.mxu0
  %v401 = vadd.f32 0.0, %v400
  %v402 = vpop.f32.mrf.mxu0
  %403 = vdwg.mxu0
  %v404 = vadd.f32 %v300, %v390
  %v405 = vadd.f32 %v303, %v393
  %v406 = vadd.f32 %v308, %v398
  %v407 = vadd.f32 %v311, %v401
  %v408 = vmul.f32 %v404, %v83
  %v409 = vmul.f32 %v405, %v84
  %v410 = vmul.f32 %v406, %v85
  %v411 = vmul.f32 %v407, %v86
  %v412 = vadd.f32 %v408, %v88
  %v413 = vadd.f32 %v409, %v89
  %v414 = vadd.f32 %v410, %v90
  %v415 = vadd.f32 %v411, %v91
  %vm416 = vcmp.ge.f32.partialorder %v412, 0.0
  %vm417 = vcmp.ge.f32.partialorder %v413, 0.0
  %vm418 = vcmp.ge.f32.partialorder %v414, 0.0
  %vm419 = vcmp.ge.f32.partialorder %v415, 0.0
  %v420 = vmul.f32 %v412, 0.01
  %v421 = vmul.f32 %v413, 0.01
  %v422 = vmul.f32 %v414, 0.01
  %v423 = vmul.f32 %v415, 0.01
  %v424 = vsel %vm416, %v412, %v420
  %v425 = vsel %vm417, %v413, %v421
  %v426 = vsel %vm418, %v414, %v422
  %v427 = vsel %vm419, %v415, %v423
  %s428 = scalar_lea.vmem %s3, 64
  %v429 = vld [vmem:[%s428] sm:$0xff]
  %v430 = vld [vmem:[%s428 + $0x8] sm:$0xff]
  %v431 = vld [vmem:[%s428 + $0x10] sm:$0xff]
  %v432 = vld [vmem:[%s428 + $0x18] sm:$0xff]
  %s433 = scalar_lea.vmem %s3, 96
  %v434 = vld [vmem:[%s433] sm:$0xff]
  %v435 = vld [vmem:[%s433 + $0x8] sm:$0xff]
  %v436 = vld [vmem:[%s433 + $0x10] sm:$0xff]
  %v437 = vld [vmem:[%s433 + $0x18] sm:$0xff]
  %v438 = vrot.slane %v424, 7
  %v439 = vrot.slane %v425, 7
  %v440 = vrot.slane %v426, 7
  %v441 = vrot.slane %v427, 7
  %v442 = vsel %vm96, %v440, %v441
  %v443 = vsel %vm96, %v439, %v440
  %v444 = vsel %vm96, %v438, %v439
  %v445 = vsel %vm96, %v441, %v438
  %v446 = vsel %vm105, %v445, 0.0
  %v447 = vsel %vm106, %v444, 0.0
  %v448 = vsel %vm107, %v443, 0.0
  %v449 = vsel %vm108, %v442, 0.0
  %v450 = vrot.slane %v424, 1
  %v451 = vrot.slane %v425, 1
  %v452 = vrot.slane %v426, 1
  %v453 = vrot.slane %v427, 1
  %v454 = vsel %vm117, %v452, %v453
  %v455 = vsel %vm117, %v451, %v452
  %v456 = vsel %vm117, %v450, %v451
  %v457 = vsel %vm117, %v453, %v450
  %v458 = vsel %vm126, %v456, 0.0
  %v459 = vsel %vm127, %v455, 0.0
  %v460 = vsel %vm128, %v454, 0.0
  %v461 = vsel %vm129, %v457, 0.0
  %v462 = vpack.c.bf16 %v447, %v446
  %v463 = vpack.c.bf16 %v449, %v448
  %v464 = vld [vmem:[%s2] sm:$0xf]
  %v465 = vld [vmem:[%s2 + $0x4] sm:$0xf]
  %v466 = vld [vmem:[%s2 + $0x8] sm:$0xf]
  %v467 = vld [vmem:[%s2 + $0xc] sm:$0xf]
  %v468 = vld [vmem:[%s2 + $0x10] sm:$0xf]
  %v469 = vld [vmem:[%s2 + $0x14] sm:$0xf]
  %v470 = vld [vmem:[%s2 + $0x18] sm:$0xf]
  %v471 = vld [vmem:[%s2 + $0x1c] sm:$0xf]
  %v472 = vld [vmem:[%s2 + $0x20] sm:$0xf]
  %v473 = vld [vmem:[%s2 + $0x24] sm:$0xf]
  %v474 = vld [vmem:[%s2 + $0x28] sm:$0xf]
  %v475 = vld [vmem:[%s2 + $0x2c] sm:$0xf]
  %v476 = vld [vmem:[%s2 + $0x30] sm:$0xf]
  %v477 = vld [vmem:[%s2 + $0x34] sm:$0xf]
  %v478 = vld [vmem:[%s2 + $0x38] sm:$0xf]
  %v479 = vld [vmem:[%s2 + $0x3c] sm:$0xf]
  %v480 = vpack.c.bf16 %v425, %v424
  %v481 = vpack.c.bf16 %v427, %v426
  %s482 = scalar_lea.vmem %s2, 64
  %v483 = vld [vmem:[%s482] sm:$0xf]
  %v484 = vld [vmem:[%s482 + $0x4] sm:$0xf]
  %v485 = vld [vmem:[%s482 + $0x8] sm:$0xf]
  %v486 = vld [vmem:[%s482 + $0xc] sm:$0xf]
  %v487 = vld [vmem:[%s482 + $0x10] sm:$0xf]
  %v488 = vld [vmem:[%s482 + $0x14] sm:$0xf]
  %v489 = vld [vmem:[%s482 + $0x18] sm:$0xf]
  %v490 = vld [vmem:[%s482 + $0x1c] sm:$0xf]
  %v491 = vld [vmem:[%s482 + $0x20] sm:$0xf]
  %v492 = vld [vmem:[%s482 + $0x24] sm:$0xf]
  %v493 = vld [vmem:[%s482 + $0x28] sm:$0xf]
  %v494 = vld [vmem:[%s482 + $0x2c] sm:$0xf]
  %v495 = vld [vmem:[%s482 + $0x30] sm:$0xf]
  %v496 = vld [vmem:[%s482 + $0x34] sm:$0xf]
  %v497 = vld [vmem:[%s482 + $0x38] sm:$0xf]
  %v498 = vld [vmem:[%s482 + $0x3c] sm:$0xf]
  %v515 = vunpack.c.l.b16 %v483
  %v516 = vunpack.c.l.b16 %v484
  %v517 = vunpack.c.l.b16 %v485
  %v518 = vunpack.c.l.b16 %v486
  %v519 = vunpack.c.l.b16 %v487
  %v520 = vunpack.c.l.b16 %v488
  %v521 = vunpack.c.l.b16 %v489
  %v522 = vunpack.c.l.b16 %v490
  %v523 = vunpack.c.l.b16 %v491
  %v524 = vunpack.c.l.b16 %v492
  %v525 = vunpack.c.l.b16 %v493
  %v526 = vunpack.c.l.b16 %v494
  %v527 = vunpack.c.l.b16 %v495
  %v528 = vunpack.c.l.b16 %v496
  %v529 = vunpack.c.l.b16 %v497
  %v530 = vunpack.c.l.b16 %v498
  %v531 = vpack.c.b16 %v516, %v515
  %v532 = vpack.c.b16 %v518, %v517
  %v533 = vpack.c.b16 %v520, %v519
  %v534 = vpack.c.b16 %v522, %v521
  %v535 = vpack.c.b16 %v524, %v523
  %v536 = vpack.c.b16 %v526, %v525
  %v537 = vpack.c.b16 %v528, %v527
  %v538 = vpack.c.b16 %v530, %v529
  %547 = vmatprep.subr.bf16.mxu0 0
  %548 = vmatpush1.bf16.msra.mxu0 %v538
  %549 = vmatprep.subr.bf16.mxu0 0
  %550 = vmatpush1.bf16.msra.mxu0 %v537
  %551 = vmatprep.subr.bf16.mxu0 0
  %552 = vmatpush1.bf16.msra.mxu0 %v536
  %553 = vmatprep.subr.bf16.mxu0 0
  %554 = vmatpush1.bf16.msra.mxu0 %v535
  %555 = vmatprep.subr.bf16.mxu0 0
  %556 = vmatpush1.bf16.msra.mxu0 %v534
  %557 = vmatprep.subr.bf16.mxu0 0
  %558 = vmatpush1.bf16.msra.mxu0 %v533
  %559 = vmatprep.subr.bf16.mxu0 0
  %560 = vmatpush1.bf16.msra.mxu0 %v532
  %561 = vmatprep.subr.bf16.mxu0 0
  %562 = vmatpush1.bf16.msra.mxu0 %v531
  %563 = vmatprep.subr.bf16.mxu0 0
  %564 = vmatpush2.bf16.msra.mxu0 0
  %565 = vmatprep.subr.bf16.mxu0 0
  %566 = vmatpush2.bf16.msra.mxu0 0
  %567 = vmatprep.subr.bf16.mxu0 0
  %568 = vmatpush2.bf16.msra.mxu0 0
  %569 = vmatprep.subr.bf16.mxu0 0
  %570 = vmatpush2.bf16.msra.mxu0 0
  %571 = vmatprep.subr.bf16.mxu0 0
  %572 = vmatpush2.bf16.msra.mxu0 0
  %573 = vmatprep.subr.bf16.mxu0 0
  %574 = vmatpush2.bf16.msra.mxu0 0
  %575 = vmatprep.subr.bf16.mxu0 0
  %576 = vmatpush2.bf16.msra.mxu0 0
  %577 = vmatprep.subr.bf16.mxu0 0
  %578 = vmatpush2.bf16.msra.mxu0 0
  %579 = vmatprep.mubr.bf16.mxu0 0
  %580 = vmatmul.mubr.bf16.gmra.mxu0 %v480
  %v581 = vpop.f32.mrf.mxu0
  %v582 = vadd.f32 0.0, %v581
  %v583 = vpop.f32.mrf.mxu0
  %v584 = vpop.f32.mrf.mxu0
  %v585 = vadd.f32 0.0, %v584
  %v586 = vpop.f32.mrf.mxu0
  %587 = vmatprep.mubr.bf16.mxu0 0
  %588 = vmatmul.mubr.bf16.gmra.mxu0 %v481
  %v589 = vpop.f32.mrf.mxu0
  %v590 = vadd.f32 0.0, %v589
  %v591 = vpop.f32.mrf.mxu0
  %v592 = vpop.f32.mrf.mxu0
  %v593 = vadd.f32 0.0, %v592
  %v594 = vpop.f32.mrf.mxu0
  %595 = vdwg.mxu0
  %v612 = vunpack.c.l.b16 %v464
  %v613 = vunpack.c.l.b16 %v465
  %v614 = vunpack.c.l.b16 %v466
  %v615 = vunpack.c.l.b16 %v467
  %v616 = vunpack.c.l.b16 %v468
  %v617 = vunpack.c.l.b16 %v469
  %v618 = vunpack.c.l.b16 %v470
  %v619 = vunpack.c.l.b16 %v471
  %v620 = vunpack.c.l.b16 %v472
  %v621 = vunpack.c.l.b16 %v473
  %v622 = vunpack.c.l.b16 %v474
  %v623 = vunpack.c.l.b16 %v475
  %v624 = vunpack.c.l.b16 %v476
  %v625 = vunpack.c.l.b16 %v477
  %v626 = vunpack.c.l.b16 %v478
  %v627 = vunpack.c.l.b16 %v479
  %v628 = vpack.c.b16 %v613, %v612
  %v629 = vpack.c.b16 %v615, %v614
  %v630 = vpack.c.b16 %v617, %v616
  %v631 = vpack.c.b16 %v619, %v618
  %v632 = vpack.c.b16 %v621, %v620
  %v633 = vpack.c.b16 %v623, %v622
  %v634 = vpack.c.b16 %v625, %v624
  %v635 = vpack.c.b16 %v627, %v626
  %644 = vmatprep.subr.bf16.mxu0 0
  %645 = vmatpush1.bf16.msra.mxu0 %v635
  %646 = vmatprep.subr.bf16.mxu0 0
  %647 = vmatpush1.bf16.msra.mxu0 %v634
  %648 = vmatprep.subr.bf16.mxu0 0
  %649 = vmatpush1.bf16.msra.mxu0 %v633
  %650 = vmatprep.subr.bf16.mxu0 0
  %651 = vmatpush1.bf16.msra.mxu0 %v632
  %652 = vmatprep.subr.bf16.mxu0 0
  %653 = vmatpush1.bf16.msra.mxu0 %v631
  %654 = vmatprep.subr.bf16.mxu0 0
  %655 = vmatpush1.bf16.msra.mxu0 %v630
  %656 = vmatprep.subr.bf16.mxu0 0
  %657 = vmatpush1.bf16.msra.mxu0 %v629
  %658 = vmatprep.subr.bf16.mxu0 0
  %659 = vmatpush1.bf16.msra.mxu0 %v628
  %660 = vmatprep.subr.bf16.mxu0 0
  %661 = vmatpush2.bf16.msra.mxu0 0
  %662 = vmatprep.subr.bf16.mxu0 0
  %663 = vmatpush2.bf16.msra.mxu0 0
  %664 = vmatprep.subr.bf16.mxu0 0
  %665 = vmatpush2.bf16.msra.mxu0 0
  %666 = vmatprep.subr.bf16.mxu0 0
  %667 = vmatpush2.bf16.msra.mxu0 0
  %668 = vmatprep.subr.bf16.mxu0 0
  %669 = vmatpush2.bf16.msra.mxu0 0
  %670 = vmatprep.subr.bf16.mxu0 0
  %671 = vmatpush2.bf16.msra.mxu0 0
  %672 = vmatprep.subr.bf16.mxu0 0
  %673 = vmatpush2.bf16.msra.mxu0 0
  %674 = vmatprep.subr.bf16.mxu0 0
  %675 = vmatpush2.bf16.msra.mxu0 0
  %676 = vmatprep.mubr.bf16.mxu0 0
  %677 = vmatmul.mubr.bf16.gmra.mxu0 %v462
  %v678 = vpop.f32.mrf.mxu0
  %v679 = vadd.f32 %v582, %v678
  %v680 = vpop.f32.mrf.mxu0
  %v681 = vpop.f32.mrf.mxu0
  %v682 = vadd.f32 %v585, %v681
  %v683 = vpop.f32.mrf.mxu0
  %684 = vmatprep.mubr.bf16.mxu0 0
  %685 = vmatmul.mubr.bf16.gmra.mxu0 %v463
  %v686 = vpop.f32.mrf.mxu0
  %v687 = vadd.f32 %v590, %v686
  %v688 = vpop.f32.mrf.mxu0
  %v689 = vpop.f32.mrf.mxu0
  %v690 = vadd.f32 %v593, %v689
  %v691 = vpop.f32.mrf.mxu0
  %692 = vdwg.mxu0
  %v693 = vpack.c.bf16 %v459, %v458
  %v694 = vpack.c.bf16 %v461, %v460
  %s695 = scalar_lea.vmem %s2, 128
  %v696 = vld [vmem:[%s695] sm:$0xf]
  %v697 = vld [vmem:[%s695 + $0x4] sm:$0xf]
  %v698 = vld [vmem:[%s695 + $0x8] sm:$0xf]
  %v699 = vld [vmem:[%s695 + $0xc] sm:$0xf]
  %v700 = vld [vmem:[%s695 + $0x10] sm:$0xf]
  %v701 = vld [vmem:[%s695 + $0x14] sm:$0xf]
  %v702 = vld [vmem:[%s695 + $0x18] sm:$0xf]
  %v703 = vld [vmem:[%s695 + $0x1c] sm:$0xf]
  %v704 = vld [vmem:[%s695 + $0x20] sm:$0xf]
  %v705 = vld [vmem:[%s695 + $0x24] sm:$0xf]
  %v706 = vld [vmem:[%s695 + $0x28] sm:$0xf]
  %v707 = vld [vmem:[%s695 + $0x2c] sm:$0xf]
  %v708 = vld [vmem:[%s695 + $0x30] sm:$0xf]
  %v709 = vld [vmem:[%s695 + $0x34] sm:$0xf]
  %v710 = vld [vmem:[%s695 + $0x38] sm:$0xf]
  %v711 = vld [vmem:[%s695 + $0x3c] sm:$0xf]
  %v728 = vunpack.c.l.b16 %v696
  %v729 = vunpack.c.l.b16 %v697
  %v730 = vunpack.c.l.b16 %v698
  %v731 = vunpack.c.l.b16 %v699
  %v732 = vunpack.c.l.b16 %v700
  %v733 = vunpack.c.l.b16 %v701
  %v734 = vunpack.c.l.b16 %v702
  %v735 = vunpack.c.l.b16 %v703
  %v736 = vunpack.c.l.b16 %v704
  %v737 = vunpack.c.l.b16 %v705
  %v738 = vunpack.c.l.b16 %v706
  %v739 = vunpack.c.l.b16 %v707
  %v740 = vunpack.c.l.b16 %v708
  %v741 = vunpack.c.l.b16 %v709
  %v742 = vunpack.c.l.b16 %v710
  %v743 = vunpack.c.l.b16 %v711
  %v744 = vpack.c.b16 %v729, %v728
  %v745 = vpack.c.b16 %v731, %v730
  %v746 = vpack.c.b16 %v733, %v732
  %v747 = vpack.c.b16 %v735, %v734
  %v748 = vpack.c.b16 %v737, %v736
  %v749 = vpack.c.b16 %v739, %v738
  %v750 = vpack.c.b16 %v741, %v740
  %v751 = vpack.c.b16 %v743, %v742
  %760 = vmatprep.subr.bf16.mxu0 0
  %761 = vmatpush1.bf16.msra.mxu0 %v751
  %762 = vmatprep.subr.bf16.mxu0 0
  %763 = vmatpush1.bf16.msra.mxu0 %v750
  %764 = vmatprep.subr.bf16.mxu0 0
  %765 = vmatpush1.bf16.msra.mxu0 %v749
  %766 = vmatprep.subr.bf16.mxu0 0
  %767 = vmatpush1.bf16.msra.mxu0 %v748
  %768 = vmatprep.subr.bf16.mxu0 0
  %769 = vmatpush1.bf16.msra.mxu0 %v747
  %770 = vmatprep.subr.bf16.mxu0 0
  %771 = vmatpush1.bf16.msra.mxu0 %v746
  %772 = vmatprep.subr.bf16.mxu0 0
  %773 = vmatpush1.bf16.msra.mxu0 %v745
  %774 = vmatprep.subr.bf16.mxu0 0
  %775 = vmatpush1.bf16.msra.mxu0 %v744
  %776 = vmatprep.subr.bf16.mxu0 0
  %777 = vmatpush2.bf16.msra.mxu0 0
  %778 = vmatprep.subr.bf16.mxu0 0
  %779 = vmatpush2.bf16.msra.mxu0 0
  %780 = vmatprep.subr.bf16.mxu0 0
  %781 = vmatpush2.bf16.msra.mxu0 0
  %782 = vmatprep.subr.bf16.mxu0 0
  %783 = vmatpush2.bf16.msra.mxu0 0
  %784 = vmatprep.subr.bf16.mxu0 0
  %785 = vmatpush2.bf16.msra.mxu0 0
  %786 = vmatprep.subr.bf16.mxu0 0
  %787 = vmatpush2.bf16.msra.mxu0 0
  %788 = vmatprep.subr.bf16.mxu0 0
  %789 = vmatpush2.bf16.msra.mxu0 0
  %790 = vmatprep.subr.bf16.mxu0 0
  %791 = vmatpush2.bf16.msra.mxu0 0
  %792 = vmatprep.mubr.bf16.mxu0 0
  %793 = vmatmul.mubr.bf16.gmra.mxu0 %v693
  %v794 = vpop.f32.mrf.mxu0
  %v795 = vadd.f32 0.0, %v794
  %v796 = vpop.f32.mrf.mxu0
  %v797 = vpop.f32.mrf.mxu0
  %v798 = vadd.f32 0.0, %v797
  %v799 = vpop.f32.mrf.mxu0
  %800 = vmatprep.mubr.bf16.mxu0 0
  %801 = vmatmul.mubr.bf16.gmra.mxu0 %v694
  %v802 = vpop.f32.mrf.mxu0
  %v803 = vadd.f32 0.0, %v802
  %v804 = vpop.f32.mrf.mxu0
  %v805 = vpop.f32.mrf.mxu0
  %v806 = vadd.f32 0.0, %v805
  %v807 = vpop.f32.mrf.mxu0
  %808 = vdwg.mxu0
  %v809 = vadd.f32 %v679, %v795
  %v810 = vadd.f32 %v682, %v798
  %v811 = vadd.f32 %v687, %v803
  %v812 = vadd.f32 %v690, %v806
  %v813 = vmul.f32 %v809, %v429
  %v814 = vmul.f32 %v810, %v430
  %v815 = vmul.f32 %v811, %v431
  %v816 = vmul.f32 %v812, %v432
  %v817 = vadd.f32 %v813, %v434
  %v818 = vadd.f32 %v814, %v435
  %v819 = vadd.f32 %v815, %v436
  %v820 = vadd.f32 %v816, %v437
  %vm821 = vcmp.ge.f32.partialorder %v817, 0.0
  %vm822 = vcmp.ge.f32.partialorder %v818, 0.0
  %vm823 = vcmp.ge.f32.partialorder %v819, 0.0
  %vm824 = vcmp.ge.f32.partialorder %v820, 0.0
  %v825 = vmul.f32 %v817, 0.01
  %v826 = vmul.f32 %v818, 0.01
  %v827 = vmul.f32 %v819, 0.01
  %v828 = vmul.f32 %v820, 0.01
  %v829 = vsel %vm821, %v817, %v825
  %v830 = vsel %vm822, %v818, %v826
  %v831 = vsel %vm823, %v819, %v827
  %v832 = vsel %vm824, %v820, %v828
  %833 = vst [vmem:[%s4] sm:$0xff] %v829
  %834 = vst [vmem:[%s4 + $0x8] sm:$0xff] %v830
  %835 = vst [vmem:[%s4 + $0x10] sm:$0xff] %v831
  %836 = vst [vmem:[%s4 + $0x18] sm:$0xff] %v832
  // Predicated region
  $region18: #{conv_module_forward.1} parent=0 // pred_check
    _
  $region19: #{conv_module_forward.1} parent=0 // pred_check_branch
    %838 = sbr.rel (0) target = $region21
  $region20: #{conv_module_forward.1} parent=0 // pred_region
    _
  $region21: #{conv_module_forward.1} parent=0 // pred_fallthru
    _
  // Predicated region
  $region22: #{conv_module_forward.1} parent=0 // pred_check
    _
  $region23: #{conv_module_forward.1} parent=0 // pred_check_branch
    %840 = sbr.rel (0) target = $region25
  $region24: #{conv_module_forward.1} parent=0 // pred_region
    _
  $region25: #{conv_module_forward.1} parent=0 // pred_fallthru
    _

</llo_original>
